<compile_context>
chip_gen: v6e
topology: v6e:2x2x1
jax: 0.10.0
libtpu: 0.0.40
codegen_flags: <defaults>
</compile_context>

<pallas_src>
import functools

import jax
import jax.numpy as jnp
from jax.experimental import pallas as pl
from jax.experimental.pallas import tpu as pltpu


def _decoder_kernel(x_ref, wih_ref, whh_ref, bg_ref, wout_ref, bout_ref,
                    o_ref, *, batch, seq, hidden):
    d_in = x_ref.shape[-1]

    # ---- hoisted input projection for ALL timesteps (single MXU call) ------
    x_flat = x_ref[...].reshape(batch * seq, d_in)                    # (B*S, 18)
    proj = (jnp.dot(x_flat, wih_ref[...], preferred_element_type=jnp.float32)
            + bg_ref[...])                                            # (B*S, 4H)
    proj = proj.reshape(batch, seq, 4 * hidden)                       # (B, S, 4H)

    whh = whh_ref[...]                                                # (H, 4H)

    h = jnp.zeros((batch, hidden), jnp.float32)
    c = jnp.zeros((batch, hidden), jnp.float32)

    # Fully-unrolled recurrence (static trip count, static slices only).
    for t in range(seq):
        gates = proj[:, t, :] + jnp.dot(h, whh,
                                        preferred_element_type=jnp.float32)
        # gate columns were pre-permuted to [i, f, o, g]:
        sig = jax.nn.sigmoid(gates[:, : 3 * hidden])   # one contiguous slab
        i_g = sig[:, 0 * hidden:1 * hidden]
        f_g = sig[:, 1 * hidden:2 * hidden]
        o_g = sig[:, 2 * hidden:3 * hidden]
        g_g = jnp.tanh(gates[:, 3 * hidden:])
        c = f_g * c + i_g * g_g
        h = o_g * jnp.tanh(c)

    # Fused (out2 ∘ out1) projection of the final hidden state.
    o_ref[...] = (jnp.dot(h, wout_ref[...], preferred_element_type=jnp.float32)
                  + bout_ref[...]).astype(o_ref.dtype)


def _prepare_kernel_params(p):
    """Torch-layout params -> kernel layout (transposed, gate-permuted, fused)."""
    H = p["w_hh"].shape[1]
    # PyTorch gate layout [i, f, g, o] -> [i, f, o, g] (sigmoid gates contiguous).
    perm = jnp.concatenate([jnp.arange(0, 2 * H),
                            jnp.arange(3 * H, 4 * H),
                            jnp.arange(2 * H, 3 * H)])
    w_ih_T = p["w_ih"].T[:, perm]                          # (18, 4H)
    w_hh_T = p["w_hh"].T[:, perm]                          # (H, 4H)
    b_gates = (p["b_ih"] + p["b_hh"])[perm][None, :]       # (1, 4H)
    # out2(out1(h)) == h @ (W1^T W2^T) + (b1 W2^T + b2)  (exact, no activation).
    w_out_T = p["w1"].T @ p["w2"].T                        # (H, 16)
    b_out = p["b1"][None, :] @ p["w2"].T + p["b2"][None, :]  # (1, 16)
    return w_ih_T, w_hh_T, b_gates, w_out_T, b_out


def decoder_rnn_forward(x_bsd, params):
    """x_bsd: (batch, seq, 18) float32 (batch-first, like the torch module input).
    Returns (batch, 16), matching self.out2(self.out1(output[-1]))."""
    B, S, D = x_bsd.shape
    H = params["w_hh"].shape[1]
    w_ih_T, w_hh_T, b_gates, w_out_T, b_out = _prepare_kernel_params(params)

    kernel = functools.partial(_decoder_kernel, batch=B, seq=S, hidden=H)
    vmem_specs = [pl.BlockSpec(memory_space=pltpu.MemorySpace.VMEM)
                  for _ in range(6)]
    return pl.pallas_call(
        kernel,
        out_shape=jax.ShapeDtypeStruct((B, 16), jnp.float32),
        in_specs=vmem_specs,
        out_specs=pl.BlockSpec(memory_space=pltpu.MemorySpace.VMEM),
    )(x_bsd, w_ih_T, w_hh_T, b_gates, w_out_T, b_out)


def _reference_forward(x_bsd, p):
    """Pure-JAX reference mirroring torch LSTM + Linear semantics exactly."""
    H = p["w_hh"].shape[1]
    B, S, _ = x_bsd.shape
    h = jnp.zeros((B, H), jnp.float32)
    c = jnp.zeros((B, H), jnp.float32)
    w_ih_T, w_hh_T = p["w_ih"].T, p["w_hh"].T
    b = p["b_ih"] + p["b_hh"]
    for t in range(S):
        gates = x_bsd[:, t, :] @ w_ih_T + h @ w_hh_T + b
        i = jax.nn.sigmoid(gates[:, 0 * H:1 * H])
        f = jax.nn.sigmoid(gates[:, 1 * H:2 * H])
        g = jnp.tanh(gates[:, 2 * H:3 * H])
        o = jax.nn.sigmoid(gates[:, 3 * H:4 * H])
        c = f * c + i * g
        h = o * jnp.tanh(c)
    y = h @ p["w1"].T + p["b1"]
    return y @ p["w2"].T + p["b2"]


def init_params(key, num_hidden):
    """Deterministic init with nn.LSTM / nn.Linear parameter shapes (torch layout)."""
    D_IN, H = 18, num_hidden
    ks = jax.random.split(key, 8)
    s = 0.1
    return {
        "w_ih": s * jax.random.normal(ks[0], (4 * H, D_IN), jnp.float32),  # weight_ih_l0
        "w_hh": s * jax.random.normal(ks[1], (4 * H, H), jnp.float32),     # weight_hh_l0
        "b_ih": s * jax.random.normal(ks[2], (4 * H,), jnp.float32),
        "b_hh": s * jax.random.normal(ks[3], (4 * H,), jnp.float32),
        "w1":   s * jax.random.normal(ks[4], (64, H), jnp.float32),        # out1.weight
        "b1":   s * jax.random.normal(ks[5], (64,), jnp.float32),
        "w2":   s * jax.random.normal(ks[6], (16, 64), jnp.float32),       # out2.weight
        "b2":   s * jax.random.normal(ks[7], (16,), jnp.float32),
    }


if __name__ == "__main__":
    key = jax.random.PRNGKey(0)
    k_x, k_p = jax.random.split(key)

    BATCH, SEQ, D_IN, HIDDEN = 2, 8, 18, 32   # 4H = 128 stays lane-aligned
    x = jax.random.normal(k_x, (BATCH, SEQ, D_IN), jnp.float32)
    params = init_params(k_p, HIDDEN)

    out = decoder_rnn_forward(x, params)
    out = jax.block_until_ready(out)

    ref = _reference_forward(x, params)
    assert out.shape == (BATCH, 16)
    assert jnp.allclose(out, ref, atol=1e-4, rtol=1e-4)

    print("KERNEL_OK")
</pallas_src>

<mosaic_0001>
module attributes {stable_mosaic.version = 11 : i64} {
  func.func @_decoder_kernel(%arg0: memref<2x8x18xf32, #tpu.memory_space<vmem>>, %arg1: memref<18x128xf32, #tpu.memory_space<vmem>>, %arg2: memref<32x128xf32, #tpu.memory_space<vmem>>, %arg3: memref<1x128xf32, #tpu.memory_space<vmem>>, %arg4: memref<32x16xf32, #tpu.memory_space<vmem>>, %arg5: memref<1x16xf32, #tpu.memory_space<vmem>>, %arg6: memref<2x16xf32, #tpu.memory_space<vmem>>) attributes {dimension_semantics = [], scalar_prefetch = 0 : i64, scratch_operands = 0 : i64, tpu.core_type = #tpu.core_type<tc>} {
    %c0 = arith.constant 0 : index
    %c0_0 = arith.constant 0 : index
    %c0_1 = arith.constant 0 : index
    %0 = vector.load %arg0[%c0, %c0_0, %c0_1] : memref<2x8x18xf32, #tpu.memory_space<vmem>>, vector<2x8x18xf32>
    %1 = vector.shape_cast %0 : vector<2x8x18xf32> to vector<16x18xf32>
    %c0_2 = arith.constant 0 : index
    %c0_3 = arith.constant 0 : index
    %2 = vector.load %arg1[%c0_2, %c0_3] : memref<18x128xf32, #tpu.memory_space<vmem>>, vector<18x128xf32>
    %cst = arith.constant dense<0.000000e+00> : vector<16x128xf32>
    %3 = tpu.matmul %1, %2, %cst {dimension_numbers = #tpu.dot_dimension_numbers<[1], [0], [0], [1], [0, 0, 1, 1], [], []>} : vector<16x18xf32>, vector<18x128xf32>, vector<16x128xf32> -> vector<16x128xf32>
    %c0_4 = arith.constant 0 : index
    %c0_5 = arith.constant 0 : index
    %4 = vector.load %arg3[%c0_4, %c0_5] : memref<1x128xf32, #tpu.memory_space<vmem>>, vector<1x128xf32>
    %5 = vector.broadcast %4 : vector<1x128xf32> to vector<16x128xf32>
    %6 = arith.addf %3, %5 : vector<16x128xf32>
    %7 = vector.shape_cast %6 : vector<16x128xf32> to vector<2x8x128xf32>
    %c0_6 = arith.constant 0 : index
    %c0_7 = arith.constant 0 : index
    %8 = vector.load %arg2[%c0_6, %c0_7] : memref<32x128xf32, #tpu.memory_space<vmem>>, vector<32x128xf32>
    %cst_8 = arith.constant 0.000000e+00 : f32
    %9 = vector.broadcast %cst_8 : f32 to vector<2x32xf32>
    %cst_9 = arith.constant 0.000000e+00 : f32
    %10 = vector.broadcast %cst_9 : f32 to vector<2x32xf32>
    %11 = vector.extract_strided_slice %7 {offsets = [0, 0, 0], sizes = [2, 1, 128], strides = [1, 1, 1]} : vector<2x8x128xf32> to vector<2x1x128xf32>
    %12 = vector.shape_cast %11 : vector<2x1x128xf32> to vector<2x128xf32>
    %cst_10 = arith.constant dense<0.000000e+00> : vector<2x128xf32>
    %13 = tpu.matmul %9, %8, %cst_10 {dimension_numbers = #tpu.dot_dimension_numbers<[1], [0], [0], [1], [0, 0, 1, 1], [], []>} : vector<2x32xf32>, vector<32x128xf32>, vector<2x128xf32> -> vector<2x128xf32>
    %14 = arith.addf %12, %13 : vector<2x128xf32>
    %15 = vector.extract_strided_slice %14 {offsets = [0, 0], sizes = [2, 96], strides = [1, 1]} : vector<2x128xf32> to vector<2x96xf32>
    %16 = arith.negf %15 : vector<2x96xf32>
    %17 = math.exp %16 : vector<2x96xf32>
    %cst_11 = arith.constant 1.000000e+00 : f32
    %18 = vector.broadcast %cst_11 : f32 to vector<2x96xf32>
    %19 = arith.addf %18, %17 : vector<2x96xf32>
    %20 = arith.divf %18, %19 : vector<2x96xf32>
    %21 = vector.extract_strided_slice %20 {offsets = [0, 0], sizes = [2, 32], strides = [1, 1]} : vector<2x96xf32> to vector<2x32xf32>
    %22 = vector.extract_strided_slice %20 {offsets = [0, 32], sizes = [2, 32], strides = [1, 1]} : vector<2x96xf32> to vector<2x32xf32>
    %23 = vector.extract_strided_slice %20 {offsets = [0, 64], sizes = [2, 32], strides = [1, 1]} : vector<2x96xf32> to vector<2x32xf32>
    %24 = vector.extract_strided_slice %14 {offsets = [0, 96], sizes = [2, 32], strides = [1, 1]} : vector<2x128xf32> to vector<2x32xf32>
    %25 = math.tanh %24 : vector<2x32xf32>
    %26 = arith.mulf %22, %10 : vector<2x32xf32>
    %27 = arith.mulf %21, %25 : vector<2x32xf32>
    %28 = arith.addf %26, %27 : vector<2x32xf32>
    %29 = math.tanh %28 : vector<2x32xf32>
    %30 = arith.mulf %23, %29 : vector<2x32xf32>
    %31 = vector.extract_strided_slice %7 {offsets = [0, 1, 0], sizes = [2, 1, 128], strides = [1, 1, 1]} : vector<2x8x128xf32> to vector<2x1x128xf32>
    %32 = vector.shape_cast %31 : vector<2x1x128xf32> to vector<2x128xf32>
    %cst_12 = arith.constant dense<0.000000e+00> : vector<2x128xf32>
    %33 = tpu.matmul %30, %8, %cst_12 {dimension_numbers = #tpu.dot_dimension_numbers<[1], [0], [0], [1], [0, 0, 1, 1], [], []>} : vector<2x32xf32>, vector<32x128xf32>, vector<2x128xf32> -> vector<2x128xf32>
    %34 = arith.addf %32, %33 : vector<2x128xf32>
    %35 = vector.extract_strided_slice %34 {offsets = [0, 0], sizes = [2, 96], strides = [1, 1]} : vector<2x128xf32> to vector<2x96xf32>
    %36 = arith.negf %35 : vector<2x96xf32>
    %37 = math.exp %36 : vector<2x96xf32>
    %cst_13 = arith.constant 1.000000e+00 : f32
    %38 = vector.broadcast %cst_13 : f32 to vector<2x96xf32>
    %39 = arith.addf %38, %37 : vector<2x96xf32>
    %40 = arith.divf %38, %39 : vector<2x96xf32>
    %41 = vector.extract_strided_slice %40 {offsets = [0, 0], sizes = [2, 32], strides = [1, 1]} : vector<2x96xf32> to vector<2x32xf32>
    %42 = vector.extract_strided_slice %40 {offsets = [0, 32], sizes = [2, 32], strides = [1, 1]} : vector<2x96xf32> to vector<2x32xf32>
    %43 = vector.extract_strided_slice %40 {offsets = [0, 64], sizes = [2, 32], strides = [1, 1]} : vector<2x96xf32> to vector<2x32xf32>
    %44 = vector.extract_strided_slice %34 {offsets = [0, 96], sizes = [2, 32], strides = [1, 1]} : vector<2x128xf32> to vector<2x32xf32>
    %45 = math.tanh %44 : vector<2x32xf32>
    %46 = arith.mulf %42, %28 : vector<2x32xf32>
    %47 = arith.mulf %41, %45 : vector<2x32xf32>
    %48 = arith.addf %46, %47 : vector<2x32xf32>
    %49 = math.tanh %48 : vector<2x32xf32>
    %50 = arith.mulf %43, %49 : vector<2x32xf32>
    %51 = vector.extract_strided_slice %7 {offsets = [0, 2, 0], sizes = [2, 1, 128], strides = [1, 1, 1]} : vector<2x8x128xf32> to vector<2x1x128xf32>
    %52 = vector.shape_cast %51 : vector<2x1x128xf32> to vector<2x128xf32>
    %cst_14 = arith.constant dense<0.000000e+00> : vector<2x128xf32>
    %53 = tpu.matmul %50, %8, %cst_14 {dimension_numbers = #tpu.dot_dimension_numbers<[1], [0], [0], [1], [0, 0, 1, 1], [], []>} : vector<2x32xf32>, vector<32x128xf32>, vector<2x128xf32> -> vector<2x128xf32>
    %54 = arith.addf %52, %53 : vector<2x128xf32>
    %55 = vector.extract_strided_slice %54 {offsets = [0, 0], sizes = [2, 96], strides = [1, 1]} : vector<2x128xf32> to vector<2x96xf32>
    %56 = arith.negf %55 : vector<2x96xf32>
    %57 = math.exp %56 : vector<2x96xf32>
    %cst_15 = arith.constant 1.000000e+00 : f32
    %58 = vector.broadcast %cst_15 : f32 to vector<2x96xf32>
    %59 = arith.addf %58, %57 : vector<2x96xf32>
    %60 = arith.divf %58, %59 : vector<2x96xf32>
    %61 = vector.extract_strided_slice %60 {offsets = [0, 0], sizes = [2, 32], strides = [1, 1]} : vector<2x96xf32> to vector<2x32xf32>
    %62 = vector.extract_strided_slice %60 {offsets = [0, 32], sizes = [2, 32], strides = [1, 1]} : vector<2x96xf32> to vector<2x32xf32>
    %63 = vector.extract_strided_slice %60 {offsets = [0, 64], sizes = [2, 32], strides = [1, 1]} : vector<2x96xf32> to vector<2x32xf32>
    %64 = vector.extract_strided_slice %54 {offsets = [0, 96], sizes = [2, 32], strides = [1, 1]} : vector<2x128xf32> to vector<2x32xf32>
    %65 = math.tanh %64 : vector<2x32xf32>
    %66 = arith.mulf %62, %48 : vector<2x32xf32>
    %67 = arith.mulf %61, %65 : vector<2x32xf32>
    %68 = arith.addf %66, %67 : vector<2x32xf32>
    %69 = math.tanh %68 : vector<2x32xf32>
    %70 = arith.mulf %63, %69 : vector<2x32xf32>
    %71 = vector.extract_strided_slice %7 {offsets = [0, 3, 0], sizes = [2, 1, 128], strides = [1, 1, 1]} : vector<2x8x128xf32> to vector<2x1x128xf32>
    %72 = vector.shape_cast %71 : vector<2x1x128xf32> to vector<2x128xf32>
    %cst_16 = arith.constant dense<0.000000e+00> : vector<2x128xf32>
    %73 = tpu.matmul %70, %8, %cst_16 {dimension_numbers = #tpu.dot_dimension_numbers<[1], [0], [0], [1], [0, 0, 1, 1], [], []>} : vector<2x32xf32>, vector<32x128xf32>, vector<2x128xf32> -> vector<2x128xf32>
    %74 = arith.addf %72, %73 : vector<2x128xf32>
    %75 = vector.extract_strided_slice %74 {offsets = [0, 0], sizes = [2, 96], strides = [1, 1]} : vector<2x128xf32> to vector<2x96xf32>
    %76 = arith.negf %75 : vector<2x96xf32>
    %77 = math.exp %76 : vector<2x96xf32>
    %cst_17 = arith.constant 1.000000e+00 : f32
    %78 = vector.broadcast %cst_17 : f32 to vector<2x96xf32>
    %79 = arith.addf %78, %77 : vector<2x96xf32>
    %80 = arith.divf %78, %79 : vector<2x96xf32>
    %81 = vector.extract_strided_slice %80 {offsets = [0, 0], sizes = [2, 32], strides = [1, 1]} : vector<2x96xf32> to vector<2x32xf32>
    %82 = vector.extract_strided_slice %80 {offsets = [0, 32], sizes = [2, 32], strides = [1, 1]} : vector<2x96xf32> to vector<2x32xf32>
    %83 = vector.extract_strided_slice %80 {offsets = [0, 64], sizes = [2, 32], strides = [1, 1]} : vector<2x96xf32> to vector<2x32xf32>
    %84 = vector.extract_strided_slice %74 {offsets = [0, 96], sizes = [2, 32], strides = [1, 1]} : vector<2x128xf32> to vector<2x32xf32>
    %85 = math.tanh %84 : vector<2x32xf32>
    %86 = arith.mulf %82, %68 : vector<2x32xf32>
    %87 = arith.mulf %81, %85 : vector<2x32xf32>
    %88 = arith.addf %86, %87 : vector<2x32xf32>
    %89 = math.tanh %88 : vector<2x32xf32>
    %90 = arith.mulf %83, %89 : vector<2x32xf32>
    %91 = vector.extract_strided_slice %7 {offsets = [0, 4, 0], sizes = [2, 1, 128], strides = [1, 1, 1]} : vector<2x8x128xf32> to vector<2x1x128xf32>
    %92 = vector.shape_cast %91 : vector<2x1x128xf32> to vector<2x128xf32>
    %cst_18 = arith.constant dense<0.000000e+00> : vector<2x128xf32>
    %93 = tpu.matmul %90, %8, %cst_18 {dimension_numbers = #tpu.dot_dimension_numbers<[1], [0], [0], [1], [0, 0, 1, 1], [], []>} : vector<2x32xf32>, vector<32x128xf32>, vector<2x128xf32> -> vector<2x128xf32>
    %94 = arith.addf %92, %93 : vector<2x128xf32>
    %95 = vector.extract_strided_slice %94 {offsets = [0, 0], sizes = [2, 96], strides = [1, 1]} : vector<2x128xf32> to vector<2x96xf32>
    %96 = arith.negf %95 : vector<2x96xf32>
    %97 = math.exp %96 : vector<2x96xf32>
    %cst_19 = arith.constant 1.000000e+00 : f32
    %98 = vector.broadcast %cst_19 : f32 to vector<2x96xf32>
    %99 = arith.addf %98, %97 : vector<2x96xf32>
    %100 = arith.divf %98, %99 : vector<2x96xf32>
    %101 = vector.extract_strided_slice %100 {offsets = [0, 0], sizes = [2, 32], strides = [1, 1]} : vector<2x96xf32> to vector<2x32xf32>
    %102 = vector.extract_strided_slice %100 {offsets = [0, 32], sizes = [2, 32], strides = [1, 1]} : vector<2x96xf32> to vector<2x32xf32>
    %103 = vector.extract_strided_slice %100 {offsets = [0, 64], sizes = [2, 32], strides = [1, 1]} : vector<2x96xf32> to vector<2x32xf32>
    %104 = vector.extract_strided_slice %94 {offsets = [0, 96], sizes = [2, 32], strides = [1, 1]} : vector<2x128xf32> to vector<2x32xf32>
    %105 = math.tanh %104 : vector<2x32xf32>
    %106 = arith.mulf %102, %88 : vector<2x32xf32>
    %107 = arith.mulf %101, %105 : vector<2x32xf32>
    %108 = arith.addf %106, %107 : vector<2x32xf32>
    %109 = math.tanh %108 : vector<2x32xf32>
    %110 = arith.mulf %103, %109 : vector<2x32xf32>
    %111 = vector.extract_strided_slice %7 {offsets = [0, 5, 0], sizes = [2, 1, 128], strides = [1, 1, 1]} : vector<2x8x128xf32> to vector<2x1x128xf32>
    %112 = vector.shape_cast %111 : vector<2x1x128xf32> to vector<2x128xf32>
    %cst_20 = arith.constant dense<0.000000e+00> : vector<2x128xf32>
    %113 = tpu.matmul %110, %8, %cst_20 {dimension_numbers = #tpu.dot_dimension_numbers<[1], [0], [0], [1], [0, 0, 1, 1], [], []>} : vector<2x32xf32>, vector<32x128xf32>, vector<2x128xf32> -> vector<2x128xf32>
    %114 = arith.addf %112, %113 : vector<2x128xf32>
    %115 = vector.extract_strided_slice %114 {offsets = [0, 0], sizes = [2, 96], strides = [1, 1]} : vector<2x128xf32> to vector<2x96xf32>
    %116 = arith.negf %115 : vector<2x96xf32>
    %117 = math.exp %116 : vector<2x96xf32>
    %cst_21 = arith.constant 1.000000e+00 : f32
    %118 = vector.broadcast %cst_21 : f32 to vector<2x96xf32>
    %119 = arith.addf %118, %117 : vector<2x96xf32>
    %120 = arith.divf %118, %119 : vector<2x96xf32>
    %121 = vector.extract_strided_slice %120 {offsets = [0, 0], sizes = [2, 32], strides = [1, 1]} : vector<2x96xf32> to vector<2x32xf32>
    %122 = vector.extract_strided_slice %120 {offsets = [0, 32], sizes = [2, 32], strides = [1, 1]} : vector<2x96xf32> to vector<2x32xf32>
    %123 = vector.extract_strided_slice %120 {offsets = [0, 64], sizes = [2, 32], strides = [1, 1]} : vector<2x96xf32> to vector<2x32xf32>
    %124 = vector.extract_strided_slice %114 {offsets = [0, 96], sizes = [2, 32], strides = [1, 1]} : vector<2x128xf32> to vector<2x32xf32>
    %125 = math.tanh %124 : vector<2x32xf32>
    %126 = arith.mulf %122, %108 : vector<2x32xf32>
    %127 = arith.mulf %121, %125 : vector<2x32xf32>
    %128 = arith.addf %126, %127 : vector<2x32xf32>
    %129 = math.tanh %128 : vector<2x32xf32>
    %130 = arith.mulf %123, %129 : vector<2x32xf32>
    %131 = vector.extract_strided_slice %7 {offsets = [0, 6, 0], sizes = [2, 1, 128], strides = [1, 1, 1]} : vector<2x8x128xf32> to vector<2x1x128xf32>
    %132 = vector.shape_cast %131 : vector<2x1x128xf32> to vector<2x128xf32>
    %cst_22 = arith.constant dense<0.000000e+00> : vector<2x128xf32>
    %133 = tpu.matmul %130, %8, %cst_22 {dimension_numbers = #tpu.dot_dimension_numbers<[1], [0], [0], [1], [0, 0, 1, 1], [], []>} : vector<2x32xf32>, vector<32x128xf32>, vector<2x128xf32> -> vector<2x128xf32>
    %134 = arith.addf %132, %133 : vector<2x128xf32>
    %135 = vector.extract_strided_slice %134 {offsets = [0, 0], sizes = [2, 96], strides = [1, 1]} : vector<2x128xf32> to vector<2x96xf32>
    %136 = arith.negf %135 : vector<2x96xf32>
    %137 = math.exp %136 : vector<2x96xf32>
    %cst_23 = arith.constant 1.000000e+00 : f32
    %138 = vector.broadcast %cst_23 : f32 to vector<2x96xf32>
    %139 = arith.addf %138, %137 : vector<2x96xf32>
    %140 = arith.divf %138, %139 : vector<2x96xf32>
    %141 = vector.extract_strided_slice %140 {offsets = [0, 0], sizes = [2, 32], strides = [1, 1]} : vector<2x96xf32> to vector<2x32xf32>
    %142 = vector.extract_strided_slice %140 {offsets = [0, 32], sizes = [2, 32], strides = [1, 1]} : vector<2x96xf32> to vector<2x32xf32>
    %143 = vector.extract_strided_slice %140 {offsets = [0, 64], sizes = [2, 32], strides = [1, 1]} : vector<2x96xf32> to vector<2x32xf32>
    %144 = vector.extract_strided_slice %134 {offsets = [0, 96], sizes = [2, 32], strides = [1, 1]} : vector<2x128xf32> to vector<2x32xf32>
    %145 = math.tanh %144 : vector<2x32xf32>
    %146 = arith.mulf %142, %128 : vector<2x32xf32>
    %147 = arith.mulf %141, %145 : vector<2x32xf32>
    %148 = arith.addf %146, %147 : vector<2x32xf32>
    %149 = math.tanh %148 : vector<2x32xf32>
    %150 = arith.mulf %143, %149 : vector<2x32xf32>
    %151 = vector.extract_strided_slice %7 {offsets = [0, 7, 0], sizes = [2, 1, 128], strides = [1, 1, 1]} : vector<2x8x128xf32> to vector<2x1x128xf32>
    %152 = vector.shape_cast %151 : vector<2x1x128xf32> to vector<2x128xf32>
    %cst_24 = arith.constant dense<0.000000e+00> : vector<2x128xf32>
    %153 = tpu.matmul %150, %8, %cst_24 {dimension_numbers = #tpu.dot_dimension_numbers<[1], [0], [0], [1], [0, 0, 1, 1], [], []>} : vector<2x32xf32>, vector<32x128xf32>, vector<2x128xf32> -> vector<2x128xf32>
    %154 = arith.addf %152, %153 : vector<2x128xf32>
    %155 = vector.extract_strided_slice %154 {offsets = [0, 0], sizes = [2, 96], strides = [1, 1]} : vector<2x128xf32> to vector<2x96xf32>
    %156 = arith.negf %155 : vector<2x96xf32>
    %157 = math.exp %156 : vector<2x96xf32>
    %cst_25 = arith.constant 1.000000e+00 : f32
    %158 = vector.broadcast %cst_25 : f32 to vector<2x96xf32>
    %159 = arith.addf %158, %157 : vector<2x96xf32>
    %160 = arith.divf %158, %159 : vector<2x96xf32>
    %161 = vector.extract_strided_slice %160 {offsets = [0, 0], sizes = [2, 32], strides = [1, 1]} : vector<2x96xf32> to vector<2x32xf32>
    %162 = vector.extract_strided_slice %160 {offsets = [0, 32], sizes = [2, 32], strides = [1, 1]} : vector<2x96xf32> to vector<2x32xf32>
    %163 = vector.extract_strided_slice %160 {offsets = [0, 64], sizes = [2, 32], strides = [1, 1]} : vector<2x96xf32> to vector<2x32xf32>
    %164 = vector.extract_strided_slice %154 {offsets = [0, 96], sizes = [2, 32], strides = [1, 1]} : vector<2x128xf32> to vector<2x32xf32>
    %165 = math.tanh %164 : vector<2x32xf32>
    %166 = arith.mulf %162, %148 : vector<2x32xf32>
    %167 = arith.mulf %161, %165 : vector<2x32xf32>
    %168 = arith.addf %166, %167 : vector<2x32xf32>
    %169 = math.tanh %168 : vector<2x32xf32>
    %170 = arith.mulf %163, %169 : vector<2x32xf32>
    %c0_26 = arith.constant 0 : index
    %c0_27 = arith.constant 0 : index
    %171 = vector.load %arg4[%c0_26, %c0_27] : memref<32x16xf32, #tpu.memory_space<vmem>>, vector<32x16xf32>
    %cst_28 = arith.constant dense<0.000000e+00> : vector<2x16xf32>
    %172 = tpu.matmul %170, %171, %cst_28 {dimension_numbers = #tpu.dot_dimension_numbers<[1], [0], [0], [1], [0, 0, 1, 1], [], []>} : vector<2x32xf32>, vector<32x16xf32>, vector<2x16xf32> -> vector<2x16xf32>
    %c0_29 = arith.constant 0 : index
    %c0_30 = arith.constant 0 : index
    %173 = vector.load %arg5[%c0_29, %c0_30] : memref<1x16xf32, #tpu.memory_space<vmem>>, vector<1x16xf32>
    %174 = vector.broadcast %173 : vector<1x16xf32> to vector<2x16xf32>
    %175 = arith.addf %172, %174 : vector<2x16xf32>
    %c0_31 = arith.constant 0 : index
    %c0_32 = arith.constant 0 : index
    %176 = vector.load %arg6[%c0_31, %c0_32] : memref<2x16xf32, #tpu.memory_space<vmem>>, vector<2x16xf32>
    tpu.vector_store %arg6[%c0_31, %c0_32], %175 {strides = array<i32>} : memref<2x16xf32, #tpu.memory_space<vmem>>, vector<2x16xf32>,
    return
  }
}

</mosaic_0001>

<llo_original>
// kernel: tpu_custom_call.1
$region0: #{tpu_custom_call.1}
  #allocation0 [shape = 'u32[]', space=smem, size = 0x4, offset = 0x4, fixed_abs, tag = 'smem constant byte address 0x4 - core index']
  #allocation1 [shape = 'u32[144,128]{1,0:T(1,128)}', space=vmem, size = 0x12000, scoped, tag = 'internal scratch']
  %s0 = inlined_call_operand.vmem [shape: f32[2,8,18], index: 0, kind: input, shape index: {}]
  %s1 = inlined_call_operand.hbm [shape: f32[18,128], index: 1, kind: input, shape index: {}]
  %s2 = inlined_call_operand.vmem [shape: f32[32,128], index: 2, kind: input, shape index: {}]
  %s3 = inlined_call_operand.vmem [shape: f32[1,128], index: 3, kind: input, shape index: {}]
  %s4 = inlined_call_operand.vmem [shape: f32[32,16], index: 4, kind: input, shape index: {}]
  %s5 = inlined_call_operand.vmem [shape: f32[1,16], index: 5, kind: input, shape index: {}]
  %s6 = inlined_call_operand.hbm [shape: f32[2,16], index: 6, kind: output, shape index: {}]
  %s7 = sld [smem:[#allocation0]]
  $region38: #{tpu_custom_call.1} parent=0
    _
  %s9 = ssub.s32 1, %s7
  %s10 = scalar_select 0, %s9, %s7
  $region1: #{tpu_custom_call.1} parent=0
    #allocation2 [shape = 'u8[12288]{0}', space=vmem, size = 0x3000, scoped, tag = 'input window, operand 1, single buffered']
    #allocation3 [shape = 's32[1]{0}', space=sflag, size = 0x4, scoped, tag = 'scoped memory for tpu_custom_call.1']
    #allocation4 [shape = 's32[1]{0}', space=sflag, size = 0x4, scoped, tag = 'scoped memory for tpu_custom_call.1']
    #allocation5 [shape = 'u8[1024]{0}', space=vmem, size = 0x400, scoped, tag = 'output window, operand 0, single buffered']
    %11 = vsyncpa [#allocation3], 0
    %12 = vsyncpa [#allocation4], 0
    // Predicated region
    $region2: #{tpu_custom_call.1} parent=1 // pred_check
      _
    $region3: #{tpu_custom_call.1} parent=1 // pred_check_branch
      %14 = sbr.rel (0) target = $region5
    $region4: #{tpu_custom_call.1} parent=1 // pred_region
      _
    $region5: #{tpu_custom_call.1} parent=1 // pred_fallthru
      _
    // Predicated region
    $region6: #{tpu_custom_call.1} parent=1 // pred_check
      _
    $region7: #{tpu_custom_call.1} parent=1 // pred_check_branch
      %16 = sbr.rel (0) target = $region9
    $region8: #{tpu_custom_call.1} parent=1 // pred_region
      %s18 = ssub.s32 384, 384
      %19 = vsyncadd [#allocation3], %s18
      %s20 = sshll.u32 [#allocation2], 4
      %s21 = int_to_ptr.vmem [resolvable:$true] %s20
      %26 = dma.hbm_to_vmem [thread:$0]  %s1, 384, %s21, [#allocation3], 128, 128, 8
    $region9: #{tpu_custom_call.1} parent=1 // pred_fallthru
      _
    // Predicated region
    $region10: #{tpu_custom_call.1} parent=1 // pred_check
      _
    $region11: #{tpu_custom_call.1} parent=1 // pred_check_branch
      %28 = sbr.rel (0) target = $region13
    $region12: #{tpu_custom_call.1} parent=1 // pred_region
      _
    $region13: #{tpu_custom_call.1} parent=1 // pred_fallthru
      _
    // Predicated region
    $region14: #{tpu_custom_call.1} parent=1 // pred_check
      _
    $region15: #{tpu_custom_call.1} parent=1 // pred_check_branch
      %30 = sbr.rel (0) target = $region17
    $region16: #{tpu_custom_call.1} parent=1 // pred_region
      _
    $region17: #{tpu_custom_call.1} parent=1 // pred_fallthru
      _
    // Predicated region
    $region18: #{tpu_custom_call.1} parent=1 // pred_check
      _
    $region19: #{tpu_custom_call.1} parent=1 // pred_check_branch
      %32 = sbr.rel (0) target = $region21
    $region20: #{tpu_custom_call.1} parent=1 // pred_region
      _
    $region21: #{tpu_custom_call.1} parent=1 // pred_fallthru
      _
    // Predicated region
    $region22: #{tpu_custom_call.1} parent=1 // pred_check
      _
    $region23: #{tpu_custom_call.1} parent=1 // pred_check_branch
      %34 = sbr.rel (0) target = $region25
    $region24: #{tpu_custom_call.1} parent=1 // pred_region
      _
    $region25: #{tpu_custom_call.1} parent=1 // pred_fallthru
      _
    // Predicated region
    $region26: #{tpu_custom_call.1} parent=1 // pred_check
      _
    $region27: #{tpu_custom_call.1} parent=1 // pred_check_branch
      %36 = sbr.rel (0) target = $region29
    $region28: #{tpu_custom_call.1} parent=1 // pred_region
      %37 = dma.done [#allocation3], 384
    $region29: #{tpu_custom_call.1} parent=1 // pred_fallthru
      _
    %v38 = vld [vmem:[%s0] sm:$0xff]
    %v39 = vld [vmem:[%s0 + $0x8] sm:$0xff]
    %v40 = vld [vmem:[#allocation2] sm:$0xff]
    %v41 = vld [vmem:[#allocation2 + $0x8] sm:$0xff]
    %v42 = vld [vmem:[#allocation2 + $0x10] sm:$0x3]
    %v43 = vld [vmem:[%s3] sm:$0x1]
    %v45 = vlaneseq
    %v46 = vshrl.u32 %v45, 7
    %v47 = vsub.s32 0, %v46
    %v48 = vrot.slane %v43, %v47
    %vm50 = vcmask 146432
    %v52 = vsel %vm50, %v38, 0
    %v55 = vsel %vm50, %v39, 0
    %vm57 = vcmask 1041408
    %v59 = vsel %vm57, %v42, 0
    %61 = vmatprep.subr.mxu0 0.0
    %62 = vmatpush1.msra.mxu0 0.0
    %63 = vmatprep.subr.mxu0 0.0
    %64 = vmatpush1.msra.mxu0 0.0
    %65 = vmatprep.subr.mxu0 0.0
    %66 = vmatpush1.msra.mxu0 0.0
    %67 = vmatprep.subr.mxu0 0.0
    %68 = vmatpush1.msra.mxu0 0.0
    %69 = vmatprep.subr.mxu0 0.0
    %70 = vmatpush1.msra.mxu0 0.0
    %71 = vmatprep.subr.mxu0 0.0
    %72 = vmatpush1.msra.mxu0 0.0
    %73 = vmatprep.subr.mxu0 0.0
    %74 = vmatpush1.msra.mxu0 0.0
    %75 = vmatprep.subr.mxu0 0.0
    %76 = vmatpush1.msra.mxu0 0.0
    %77 = vmatprep.subr.mxu0 0.0
    %78 = vmatpush1.msra.mxu0 0.0
    %79 = vmatprep.subr.mxu0 0.0
    %80 = vmatpush1.msra.mxu0 0.0
    %81 = vmatprep.subr.mxu0 0.0
    %82 = vmatpush1.msra.mxu0 0.0
    %83 = vmatprep.subr.mxu0 0.0
    %84 = vmatpush1.msra.mxu0 0.0
    %85 = vmatprep.subr.mxu0 0.0
    %86 = vmatpush1.msra.mxu0 0.0
    %87 = vmatprep.subr.mxu0 0.0
    %88 = vmatpush1.msra.mxu0 %v59
    %89 = vmatprep.subr.mxu0 0.0
    %90 = vmatpush1.msra.mxu0 %v41
    %91 = vmatprep.subr.mxu0 0.0
    %92 = vmatpush1.msra.mxu0 %v40
    %93 = vmatprep.subr.mxu0 0.0
    %94 = vmatpush2.msra.mxu0 0.0
    %95 = vmatprep.subr.mxu0 0.0
    %96 = vmatpush2.msra.mxu0 0.0
    %97 = vmatprep.subr.mxu0 0.0
    %98 = vmatpush2.msra.mxu0 0.0
    %99 = vmatprep.subr.mxu0 0.0
    %100 = vmatpush2.msra.mxu0 0.0
    %101 = vmatprep.subr.mxu0 0.0
    %102 = vmatpush2.msra.mxu0 0.0
    %103 = vmatprep.subr.mxu0 0.0
    %104 = vmatpush2.msra.mxu0 0.0
    %105 = vmatprep.subr.mxu0 0.0
    %106 = vmatpush2.msra.mxu0 0.0
    %107 = vmatprep.subr.mxu0 0.0
    %108 = vmatpush2.msra.mxu0 0.0
    %109 = vmatprep.subr.mxu0 0.0
    %110 = vmatpush2.msra.mxu0 0.0
    %111 = vmatprep.subr.mxu0 0.0
    %112 = vmatpush2.msra.mxu0 0.0
    %113 = vmatprep.subr.mxu0 0.0
    %114 = vmatpush2.msra.mxu0 0.0
    %115 = vmatprep.subr.mxu0 0.0
    %116 = vmatpush2.msra.mxu0 0.0
    %117 = vmatprep.subr.mxu0 0.0
    %118 = vmatpush2.msra.mxu0 0.0
    %119 = vmatprep.subr.mxu0 0.0
    %120 = vmatpush2.msra.mxu0 0.0
    %121 = vmatprep.subr.mxu0 0.0
    %122 = vmatpush2.msra.mxu0 0.0
    %123 = vmatprep.subr.mxu0 0.0
    %124 = vmatpush2.msra.mxu0 0.0
    %125 = vmatprep.mubr.f32.mxu0 0.0
    %126 = vmatmul.mubr.f32.gmra.mxu0 %v52
    %v127 = vpop.f32.mrf.mxu0
    %v128 = vadd.f32 %v48, %v127
    %v129 = vpop.f32.mrf.mxu0
    %130 = vmatprep.mubr.f32.mxu0 0.0
    %131 = vmatmul.mubr.f32.gmra.mxu0 %v55
    %v132 = vpop.f32.mrf.mxu0
    %v133 = vadd.f32 %v48, %v132
    %v134 = vpop.f32.mrf.mxu0
    %135 = vdwg.mxu0
    %v136 = vld [vmem:[%s2] sm:$0xff]
    %v137 = vld [vmem:[%s2 + $0x8] sm:$0xff]
    %v138 = vld [vmem:[%s2 + $0x10] sm:$0xff]
    %v139 = vld [vmem:[%s2 + $0x18] sm:$0xff]
    %vm140 = vcmask 261120
    %v142 = vsel %vm140, 0.0, 0
    %144 = vmatprep.subr.mxu0 0.0
    %145 = vmatpush1.msra.mxu0 0.0
    %146 = vmatprep.subr.mxu0 0.0
    %147 = vmatpush1.msra.mxu0 0.0
    %148 = vmatprep.subr.mxu0 0.0
    %149 = vmatpush1.msra.mxu0 0.0
    %150 = vmatprep.subr.mxu0 0.0
    %151 = vmatpush1.msra.mxu0 0.0
    %152 = vmatprep.subr.mxu0 0.0
    %153 = vmatpush1.msra.mxu0 0.0
    %154 = vmatprep.subr.mxu0 0.0
    %155 = vmatpush1.msra.mxu0 0.0
    %156 = vmatprep.subr.mxu0 0.0
    %157 = vmatpush1.msra.mxu0 0.0
    %158 = vmatprep.subr.mxu0 0.0
    %159 = vmatpush1.msra.mxu0 0.0
    %160 = vmatprep.subr.mxu0 0.0
    %161 = vmatpush1.msra.mxu0 0.0
    %162 = vmatprep.subr.mxu0 0.0
    %163 = vmatpush1.msra.mxu0 0.0
    %164 = vmatprep.subr.mxu0 0.0
    %165 = vmatpush1.msra.mxu0 0.0
    %166 = vmatprep.subr.mxu0 0.0
    %167 = vmatpush1.msra.mxu0 0.0
    %168 = vmatprep.subr.mxu0 0.0
    %169 = vmatpush1.msra.mxu0 %v139
    %170 = vmatprep.subr.mxu0 0.0
    %171 = vmatpush1.msra.mxu0 %v138
    %172 = vmatprep.subr.mxu0 0.0
    %173 = vmatpush1.msra.mxu0 %v137
    %174 = vmatprep.subr.mxu0 0.0
    %175 = vmatpush1.msra.mxu0 %v136
    %176 = vmatprep.subr.mxu0 0.0
    %177 = vmatpush2.msra.mxu0 0.0
    %178 = vmatprep.subr.mxu0 0.0
    %179 = vmatpush2.msra.mxu0 0.0
    %180 = vmatprep.subr.mxu0 0.0
    %181 = vmatpush2.msra.mxu0 0.0
    %182 = vmatprep.subr.mxu0 0.0
    %183 = vmatpush2.msra.mxu0 0.0
    %184 = vmatprep.subr.mxu0 0.0
    %185 = vmatpush2.msra.mxu0 0.0
    %186 = vmatprep.subr.mxu0 0.0
    %187 = vmatpush2.msra.mxu0 0.0
    %188 = vmatprep.subr.mxu0 0.0
    %189 = vmatpush2.msra.mxu0 0.0
    %190 = vmatprep.subr.mxu0 0.0
    %191 = vmatpush2.msra.mxu0 0.0
    %192 = vmatprep.subr.mxu0 0.0
    %193 = vmatpush2.msra.mxu0 0.0
    %194 = vmatprep.subr.mxu0 0.0
    %195 = vmatpush2.msra.mxu0 0.0
    %196 = vmatprep.subr.mxu0 0.0
    %197 = vmatpush2.msra.mxu0 0.0
    %198 = vmatprep.subr.mxu0 0.0
    %199 = vmatpush2.msra.mxu0 0.0
    %200 = vmatprep.subr.mxu0 0.0
    %201 = vmatpush2.msra.mxu0 0.0
    %202 = vmatprep.subr.mxu0 0.0
    %203 = vmatpush2.msra.mxu0 0.0
    %204 = vmatprep.subr.mxu0 0.0
    %205 = vmatpush2.msra.mxu0 0.0
    %206 = vmatprep.subr.mxu0 0.0
    %207 = vmatpush2.msra.mxu0 0.0
    %208 = vmatprep.mubr.f32.mxu0 0.0
    %209 = vmatmul.mubr.f32.gmra.mxu0 %v142
    %v210 = vpop.f32.mrf.mxu0
    %v211 = vadd.f32 0.0, %v210
    %v212 = vpop.f32.mrf.mxu0
    %213 = vdwg.mxu0
    %v215 = vrot.slane %v211, 1
    %v218 = vadd.f32 %v128, %v211
    %v219 = vadd.f32 %v133, %v215
    %v220 = vxor.u32 %v218, 2147483648
    %v221 = vxor.u32 %v219, 2147483648
    %v222 = vmul.f32 %v220, 1.442695
    %v223 = vpow.pop %v222
    %v224 = vmul.f32 %v221, 1.442695
    %v225 = vpow.pop %v224
    %v226 = vadd.f32 %v223, 1.0
    %v227 = vadd.f32 %v225, 1.0
    %v228 = vrcp.pop %v226
    %v229 = vmul.f32 1.0, %v228
    %v230 = vrcp.pop %v227
    %v231 = vmul.f32 1.0, %v230
    %v232 = vtanh.pop %v218
    %v233 = vtanh.pop %v219
    %v234 = vmul.f32 %v229, 0.0
    %v235 = vmul.f32 %v231, 0.0
    %238 = vrot.lane.b32.xlu0 %v232, 32
    %v239 = vpop.permute.xlu0 %238
    %240 = vrot.lane.b32.xlu0 %v233, 32
    %v241 = vpop.permute.xlu0 %240
    %v244 = vmul.f32 %v229, %v239
    %v245 = vmul.f32 %v231, %v241
    %248 = vrot.lane.b32.xlu0 %v244, 32
    %v249 = vpop.permute.xlu0 %248
    %250 = vrot.lane.b32.xlu0 %v245, 32
    %v251 = vpop.permute.xlu0 %250
    %v254 = vadd.f32 %v234, %v249
    %v255 = vadd.f32 %v235, %v251
    %v256 = vtanh.pop %v254
    %v257 = vtanh.pop %v255
    %260 = vrot.lane.b32.xlu0 %v256, 32
    %v261 = vpop.permute.xlu0 %260
    %262 = vrot.lane.b32.xlu0 %v257, 32
    %v263 = vpop.permute.xlu0 %262
    %v266 = vmul.f32 %v229, %v261
    %v267 = vmul.f32 %v231, %v263
    %v270 = vrot.slane %v267, 7
    %vm271 = vcmask 1041409
    %v272 = vsel %vm271, %v270, %v266
    %273 = vrot.lane.b32.xlu0 %v272, 64
    %v274 = vpop.permute.xlu0 %273
    %v275 = vsel %vm140, %v274, 0
    %277 = vmatprep.subr.mxu0 0.0
    %278 = vmatpush1.msra.mxu0 0.0
    %279 = vmatprep.subr.mxu0 0.0
    %280 = vmatpush1.msra.mxu0 0.0
    %281 = vmatprep.subr.mxu0 0.0
    %282 = vmatpush1.msra.mxu0 0.0
    %283 = vmatprep.subr.mxu0 0.0
    %284 = vmatpush1.msra.mxu0 0.0
    %285 = vmatprep.subr.mxu0 0.0
    %286 = vmatpush1.msra.mxu0 0.0
    %287 = vmatprep.subr.mxu0 0.0
    %288 = vmatpush1.msra.mxu0 0.0
    %289 = vmatprep.subr.mxu0 0.0
    %290 = vmatpush1.msra.mxu0 0.0
    %291 = vmatprep.subr.mxu0 0.0
    %292 = vmatpush1.msra.mxu0 0.0
    %293 = vmatprep.subr.mxu0 0.0
    %294 = vmatpush1.msra.mxu0 0.0
    %295 = vmatprep.subr.mxu0 0.0
    %296 = vmatpush1.msra.mxu0 0.0
    %297 = vmatprep.subr.mxu0 0.0
    %298 = vmatpush1.msra.mxu0 0.0
    %299 = vmatprep.subr.mxu0 0.0
    %300 = vmatpush1.msra.mxu0 0.0
    %301 = vmatprep.subr.mxu0 0.0
    %302 = vmatpush1.msra.mxu0 %v139
    %303 = vmatprep.subr.mxu0 0.0
    %304 = vmatpush1.msra.mxu0 %v138
    %305 = vmatprep.subr.mxu0 0.0
    %306 = vmatpush1.msra.mxu0 %v137
    %307 = vmatprep.subr.mxu0 0.0
    %308 = vmatpush1.msra.mxu0 %v136
    %309 = vmatprep.subr.mxu0 0.0
    %310 = vmatpush2.msra.mxu0 0.0
    %311 = vmatprep.subr.mxu0 0.0
    %312 = vmatpush2.msra.mxu0 0.0
    %313 = vmatprep.subr.mxu0 0.0
    %314 = vmatpush2.msra.mxu0 0.0
    %315 = vmatprep.subr.mxu0 0.0
    %316 = vmatpush2.msra.mxu0 0.0
    %317 = vmatprep.subr.mxu0 0.0
    %318 = vmatpush2.msra.mxu0 0.0
    %319 = vmatprep.subr.mxu0 0.0
    %320 = vmatpush2.msra.mxu0 0.0
    %321 = vmatprep.subr.mxu0 0.0
    %322 = vmatpush2.msra.mxu0 0.0
    %323 = vmatprep.subr.mxu0 0.0
    %324 = vmatpush2.msra.mxu0 0.0
    %325 = vmatprep.subr.mxu0 0.0
    %326 = vmatpush2.msra.mxu0 0.0
    %327 = vmatprep.subr.mxu0 0.0
    %328 = vmatpush2.msra.mxu0 0.0
    %329 = vmatprep.subr.mxu0 0.0
    %330 = vmatpush2.msra.mxu0 0.0
    %331 = vmatprep.subr.mxu0 0.0
    %332 = vmatpush2.msra.mxu0 0.0
    %333 = vmatprep.subr.mxu0 0.0
    %334 = vmatpush2.msra.mxu0 0.0
    %335 = vmatprep.subr.mxu0 0.0
    %336 = vmatpush2.msra.mxu0 0.0
    %337 = vmatprep.subr.mxu0 0.0
    %338 = vmatpush2.msra.mxu0 0.0
    %339 = vmatprep.subr.mxu0 0.0
    %340 = vmatpush2.msra.mxu0 0.0
    %341 = vmatprep.mubr.f32.mxu0 0.0
    %342 = vmatmul.mubr.f32.gmra.mxu0 %v275
    %v343 = vpop.f32.mrf.mxu0
    %v344 = vadd.f32 0.0, %v343
    %v345 = vpop.f32.mrf.mxu0
    %346 = vdwg.mxu0
    %v348 = vrot.slane %v344, 7
    %v351 = vadd.f32 %v128, %v348
    %v352 = vadd.f32 %v133, %v344
    %v353 = vxor.u32 %v351, 2147483648
    %v354 = vxor.u32 %v352, 2147483648
    %v355 = vmul.f32 %v353, 1.442695
    %v356 = vpow.pop %v355
    %v357 = vmul.f32 %v354, 1.442695
    %v358 = vpow.pop %v357
    %v359 = vadd.f32 %v356, 1.0
    %v360 = vadd.f32 %v358, 1.0
    %v361 = vrcp.pop %v359
    %v362 = vmul.f32 1.0, %v361
    %v363 = vrcp.pop %v360
    %v364 = vmul.f32 1.0, %v363
    %v365 = vtanh.pop %v351
    %v366 = vtanh.pop %v352
    %v369 = vrot.slane %v254, 7
    %v370 = vrot.slane %v255, 7
    %v373 = vmul.f32 %v362, %v369
    %v374 = vmul.f32 %v364, %v370
    %377 = vrot.lane.b32.xlu0 %v365, 32
    %v378 = vpop.permute.xlu0 %377
    %379 = vrot.lane.b32.xlu0 %v366, 32
    %v380 = vpop.permute.xlu0 %379
    %v383 = vmul.f32 %v362, %v378
    %v384 = vmul.f32 %v364, %v380
    %387 = vrot.lane.b32.xlu0 %v383, 32
    %v388 = vpop.permute.xlu0 %387
    %389 = vrot.lane.b32.xlu0 %v384, 32
    %v390 = vpop.permute.xlu0 %389
    %v393 = vadd.f32 %v373, %v388
    %v394 = vadd.f32 %v374, %v390
    %v395 = vtanh.pop %v393
    %v396 = vtanh.pop %v394
    %399 = vrot.lane.b32.xlu0 %v395, 32
    %v400 = vpop.permute.xlu0 %399
    %401 = vrot.lane.b32.xlu0 %v396, 32
    %v402 = vpop.permute.xlu0 %401
    %v405 = vmul.f32 %v362, %v400
    %v406 = vmul.f32 %v364, %v402
    %v409 = vrot.slane %v405, 1
    %v410 = vsel %vm271, %v406, %v409
    %411 = vrot.lane.b32.xlu0 %v410, 64
    %v412 = vpop.permute.xlu0 %411
    %v413 = vsel %vm140, %v412, 0
    %415 = vmatprep.subr.mxu0 0.0
    %416 = vmatpush1.msra.mxu0 0.0
    %417 = vmatprep.subr.mxu0 0.0
    %418 = vmatpush1.msra.mxu0 0.0
    %419 = vmatprep.subr.mxu0 0.0
    %420 = vmatpush1.msra.mxu0 0.0
    %421 = vmatprep.subr.mxu0 0.0
    %422 = vmatpush1.msra.mxu0 0.0
    %423 = vmatprep.subr.mxu0 0.0
    %424 = vmatpush1.msra.mxu0 0.0
    %425 = vmatprep.subr.mxu0 0.0
    %426 = vmatpush1.msra.mxu0 0.0
    %427 = vmatprep.subr.mxu0 0.0
    %428 = vmatpush1.msra.mxu0 0.0
    %429 = vmatprep.subr.mxu0 0.0
    %430 = vmatpush1.msra.mxu0 0.0
    %431 = vmatprep.subr.mxu0 0.0
    %432 = vmatpush1.msra.mxu0 0.0
    %433 = vmatprep.subr.mxu0 0.0
    %434 = vmatpush1.msra.mxu0 0.0
    %435 = vmatprep.subr.mxu0 0.0
    %436 = vmatpush1.msra.mxu0 0.0
    %437 = vmatprep.subr.mxu0 0.0
    %438 = vmatpush1.msra.mxu0 0.0
    %439 = vmatprep.subr.mxu0 0.0
    %440 = vmatpush1.msra.mxu0 %v139
    %441 = vmatprep.subr.mxu0 0.0
    %442 = vmatpush1.msra.mxu0 %v138
    %443 = vmatprep.subr.mxu0 0.0
    %444 = vmatpush1.msra.mxu0 %v137
    %445 = vmatprep.subr.mxu0 0.0
    %446 = vmatpush1.msra.mxu0 %v136
    %447 = vmatprep.subr.mxu0 0.0
    %448 = vmatpush2.msra.mxu0 0.0
    %449 = vmatprep.subr.mxu0 0.0
    %450 = vmatpush2.msra.mxu0 0.0
    %451 = vmatprep.subr.mxu0 0.0
    %452 = vmatpush2.msra.mxu0 0.0
    %453 = vmatprep.subr.mxu0 0.0
    %454 = vmatpush2.msra.mxu0 0.0
    %455 = vmatprep.subr.mxu0 0.0
    %456 = vmatpush2.msra.mxu0 0.0
    %457 = vmatprep.subr.mxu0 0.0
    %458 = vmatpush2.msra.mxu0 0.0
    %459 = vmatprep.subr.mxu0 0.0
    %460 = vmatpush2.msra.mxu0 0.0
    %461 = vmatprep.subr.mxu0 0.0
    %462 = vmatpush2.msra.mxu0 0.0
    %463 = vmatprep.subr.mxu0 0.0
    %464 = vmatpush2.msra.mxu0 0.0
    %465 = vmatprep.subr.mxu0 0.0
    %466 = vmatpush2.msra.mxu0 0.0
    %467 = vmatprep.subr.mxu0 0.0
    %468 = vmatpush2.msra.mxu0 0.0
    %469 = vmatprep.subr.mxu0 0.0
    %470 = vmatpush2.msra.mxu0 0.0
    %471 = vmatprep.subr.mxu0 0.0
    %472 = vmatpush2.msra.mxu0 0.0
    %473 = vmatprep.subr.mxu0 0.0
    %474 = vmatpush2.msra.mxu0 0.0
    %475 = vmatprep.subr.mxu0 0.0
    %476 = vmatpush2.msra.mxu0 0.0
    %477 = vmatprep.subr.mxu0 0.0
    %478 = vmatpush2.msra.mxu0 0.0
    %479 = vmatprep.mubr.f32.mxu0 0.0
    %480 = vmatmul.mubr.f32.gmra.mxu0 %v413
    %v481 = vpop.f32.mrf.mxu0
    %v482 = vadd.f32 0.0, %v481
    %v483 = vpop.f32.mrf.mxu0
    %484 = vdwg.mxu0
    %v486 = vrot.slane %v482, 6
    %v487 = vrot.slane %v482, 7
    %v490 = vadd.f32 %v128, %v486
    %v491 = vadd.f32 %v133, %v487
    %v492 = vxor.u32 %v490, 2147483648
    %v493 = vxor.u32 %v491, 2147483648
    %v494 = vmul.f32 %v492, 1.442695
    %v495 = vpow.pop %v494
    %v496 = vmul.f32 %v493, 1.442695
    %v497 = vpow.pop %v496
    %v498 = vadd.f32 %v495, 1.0
    %v499 = vadd.f32 %v497, 1.0
    %v500 = vrcp.pop %v498
    %v501 = vmul.f32 1.0, %v500
    %v502 = vrcp.pop %v499
    %v503 = vmul.f32 1.0, %v502
    %v504 = vtanh.pop %v490
    %v505 = vtanh.pop %v491
    %v508 = vrot.slane %v393, 7
    %v509 = vrot.slane %v394, 7
    %v512 = vmul.f32 %v501, %v508
    %v513 = vmul.f32 %v503, %v509
    %516 = vrot.lane.b32.xlu0 %v504, 32
    %v517 = vpop.permute.xlu0 %516
    %518 = vrot.lane.b32.xlu0 %v505, 32
    %v519 = vpop.permute.xlu0 %518
    %v522 = vmul.f32 %v501, %v517
    %v523 = vmul.f32 %v503, %v519
    %526 = vrot.lane.b32.xlu0 %v522, 32
    %v527 = vpop.permute.xlu0 %526
    %528 = vrot.lane.b32.xlu0 %v523, 32
    %v529 = vpop.permute.xlu0 %528
    %v532 = vadd.f32 %v512, %v527
    %v533 = vadd.f32 %v513, %v529
    %v534 = vtanh.pop %v532
    %v535 = vtanh.pop %v533
    %538 = vrot.lane.b32.xlu0 %v534, 32
    %v539 = vpop.permute.xlu0 %538
    %540 = vrot.lane.b32.xlu0 %v535, 32
    %v541 = vpop.permute.xlu0 %540
    %v544 = vmul.f32 %v501, %v539
    %v545 = vmul.f32 %v503, %v541
    %v548 = vrot.slane %v544, 2
    %v549 = vrot.slane %v545, 1
    %v550 = vsel %vm271, %v549, %v548
    %551 = vrot.lane.b32.xlu0 %v550, 64
    %v552 = vpop.permute.xlu0 %551
    %v553 = vsel %vm140, %v552, 0
    %555 = vmatprep.subr.mxu0 0.0
    %556 = vmatpush1.msra.mxu0 0.0
    %557 = vmatprep.subr.mxu0 0.0
    %558 = vmatpush1.msra.mxu0 0.0
    %559 = vmatprep.subr.mxu0 0.0
    %560 = vmatpush1.msra.mxu0 0.0
    %561 = vmatprep.subr.mxu0 0.0
    %562 = vmatpush1.msra.mxu0 0.0
    %563 = vmatprep.subr.mxu0 0.0
    %564 = vmatpush1.msra.mxu0 0.0
    %565 = vmatprep.subr.mxu0 0.0
    %566 = vmatpush1.msra.mxu0 0.0
    %567 = vmatprep.subr.mxu0 0.0
    %568 = vmatpush1.msra.mxu0 0.0
    %569 = vmatprep.subr.mxu0 0.0
    %570 = vmatpush1.msra.mxu0 0.0
    %571 = vmatprep.subr.mxu0 0.0
    %572 = vmatpush1.msra.mxu0 0.0
    %573 = vmatprep.subr.mxu0 0.0
    %574 = vmatpush1.msra.mxu0 0.0
    %575 = vmatprep.subr.mxu0 0.0
    %576 = vmatpush1.msra.mxu0 0.0
    %577 = vmatprep.subr.mxu0 0.0
    %578 = vmatpush1.msra.mxu0 0.0
    %579 = vmatprep.subr.mxu0 0.0
    %580 = vmatpush1.msra.mxu0 %v139
    %581 = vmatprep.subr.mxu0 0.0
    %582 = vmatpush1.msra.mxu0 %v138
    %583 = vmatprep.subr.mxu0 0.0
    %584 = vmatpush1.msra.mxu0 %v137
    %585 = vmatprep.subr.mxu0 0.0
    %586 = vmatpush1.msra.mxu0 %v136
    %587 = vmatprep.subr.mxu0 0.0
    %588 = vmatpush2.msra.mxu0 0.0
    %589 = vmatprep.subr.mxu0 0.0
    %590 = vmatpush2.msra.mxu0 0.0
    %591 = vmatprep.subr.mxu0 0.0
    %592 = vmatpush2.msra.mxu0 0.0
    %593 = vmatprep.subr.mxu0 0.0
    %594 = vmatpush2.msra.mxu0 0.0
    %595 = vmatprep.subr.mxu0 0.0
    %596 = vmatpush2.msra.mxu0 0.0
    %597 = vmatprep.subr.mxu0 0.0
    %598 = vmatpush2.msra.mxu0 0.0
    %599 = vmatprep.subr.mxu0 0.0
    %600 = vmatpush2.msra.mxu0 0.0
    %601 = vmatprep.subr.mxu0 0.0
    %602 = vmatpush2.msra.mxu0 0.0
    %603 = vmatprep.subr.mxu0 0.0
    %604 = vmatpush2.msra.mxu0 0.0
    %605 = vmatprep.subr.mxu0 0.0
    %606 = vmatpush2.msra.mxu0 0.0
    %607 = vmatprep.subr.mxu0 0.0
    %608 = vmatpush2.msra.mxu0 0.0
    %609 = vmatprep.subr.mxu0 0.0
    %610 = vmatpush2.msra.mxu0 0.0
    %611 = vmatprep.subr.mxu0 0.0
    %612 = vmatpush2.msra.mxu0 0.0
    %613 = vmatprep.subr.mxu0 0.0
    %614 = vmatpush2.msra.mxu0 0.0
    %615 = vmatprep.subr.mxu0 0.0
    %616 = vmatpush2.msra.mxu0 0.0
    %617 = vmatprep.subr.mxu0 0.0
    %618 = vmatpush2.msra.mxu0 0.0
    %619 = vmatprep.mubr.f32.mxu0 0.0
    %620 = vmatmul.mubr.f32.gmra.mxu0 %v553
    %v621 = vpop.f32.mrf.mxu0
    %v622 = vadd.f32 0.0, %v621
    %v623 = vpop.f32.mrf.mxu0
    %624 = vdwg.mxu0
    %v626 = vrot.slane %v622, 5
    %v627 = vrot.slane %v622, 6
    %v630 = vadd.f32 %v128, %v626
    %v631 = vadd.f32 %v133, %v627
    %v632 = vxor.u32 %v630, 2147483648
    %v633 = vxor.u32 %v631, 2147483648
    %v634 = vmul.f32 %v632, 1.442695
    %v635 = vpow.pop %v634
    %v636 = vmul.f32 %v633, 1.442695
    %v637 = vpow.pop %v636
    %v638 = vadd.f32 %v635, 1.0
    %v639 = vadd.f32 %v637, 1.0
    %v640 = vrcp.pop %v638
    %v641 = vmul.f32 1.0, %v640
    %v642 = vrcp.pop %v639
    %v643 = vmul.f32 1.0, %v642
    %v644 = vtanh.pop %v630
    %v645 = vtanh.pop %v631
    %v648 = vrot.slane %v532, 7
    %v649 = vrot.slane %v533, 7
    %v652 = vmul.f32 %v641, %v648
    %v653 = vmul.f32 %v643, %v649
    %656 = vrot.lane.b32.xlu0 %v644, 32
    %v657 = vpop.permute.xlu0 %656
    %658 = vrot.lane.b32.xlu0 %v645, 32
    %v659 = vpop.permute.xlu0 %658
    %v662 = vmul.f32 %v641, %v657
    %v663 = vmul.f32 %v643, %v659
    %666 = vrot.lane.b32.xlu0 %v662, 32
    %v667 = vpop.permute.xlu0 %666
    %668 = vrot.lane.b32.xlu0 %v663, 32
    %v669 = vpop.permute.xlu0 %668
    %v672 = vadd.f32 %v652, %v667
    %v673 = vadd.f32 %v653, %v669
    %v674 = vtanh.pop %v672
    %v675 = vtanh.pop %v673
    %678 = vrot.lane.b32.xlu0 %v674, 32
    %v679 = vpop.permute.xlu0 %678
    %680 = vrot.lane.b32.xlu0 %v675, 32
    %v681 = vpop.permute.xlu0 %680
    %v684 = vmul.f32 %v641, %v679
    %v685 = vmul.f32 %v643, %v681
    %v688 = vrot.slane %v684, 3
    %v689 = vrot.slane %v685, 2
    %v690 = vsel %vm271, %v689, %v688
    %691 = vrot.lane.b32.xlu0 %v690, 64
    %v692 = vpop.permute.xlu0 %691
    %v693 = vsel %vm140, %v692, 0
    %695 = vmatprep.subr.mxu0 0.0
    %696 = vmatpush1.msra.mxu0 0.0
    %697 = vmatprep.subr.mxu0 0.0
    %698 = vmatpush1.msra.mxu0 0.0
    %699 = vmatprep.subr.mxu0 0.0
    %700 = vmatpush1.msra.mxu0 0.0
    %701 = vmatprep.subr.mxu0 0.0
    %702 = vmatpush1.msra.mxu0 0.0
    %703 = vmatprep.subr.mxu0 0.0
    %704 = vmatpush1.msra.mxu0 0.0
    %705 = vmatprep.subr.mxu0 0.0
    %706 = vmatpush1.msra.mxu0 0.0
    %707 = vmatprep.subr.mxu0 0.0
    %708 = vmatpush1.msra.mxu0 0.0
    %709 = vmatprep.subr.mxu0 0.0
    %710 = vmatpush1.msra.mxu0 0.0
    %711 = vmatprep.subr.mxu0 0.0
    %712 = vmatpush1.msra.mxu0 0.0
    %713 = vmatprep.subr.mxu0 0.0
    %714 = vmatpush1.msra.mxu0 0.0
    %715 = vmatprep.subr.mxu0 0.0
    %716 = vmatpush1.msra.mxu0 0.0
    %717 = vmatprep.subr.mxu0 0.0
    %718 = vmatpush1.msra.mxu0 0.0
    %719 = vmatprep.subr.mxu0 0.0
    %720 = vmatpush1.msra.mxu0 %v139
    %721 = vmatprep.subr.mxu0 0.0
    %722 = vmatpush1.msra.mxu0 %v138
    %723 = vmatprep.subr.mxu0 0.0
    %724 = vmatpush1.msra.mxu0 %v137
    %725 = vmatprep.subr.mxu0 0.0
    %726 = vmatpush1.msra.mxu0 %v136
    %727 = vmatprep.subr.mxu0 0.0
    %728 = vmatpush2.msra.mxu0 0.0
    %729 = vmatprep.subr.mxu0 0.0
    %730 = vmatpush2.msra.mxu0 0.0
    %731 = vmatprep.subr.mxu0 0.0
    %732 = vmatpush2.msra.mxu0 0.0
    %733 = vmatprep.subr.mxu0 0.0
    %734 = vmatpush2.msra.mxu0 0.0
    %735 = vmatprep.subr.mxu0 0.0
    %736 = vmatpush2.msra.mxu0 0.0
    %737 = vmatprep.subr.mxu0 0.0
    %738 = vmatpush2.msra.mxu0 0.0
    %739 = vmatprep.subr.mxu0 0.0
    %740 = vmatpush2.msra.mxu0 0.0
    %741 = vmatprep.subr.mxu0 0.0
    %742 = vmatpush2.msra.mxu0 0.0
    %743 = vmatprep.subr.mxu0 0.0
    %744 = vmatpush2.msra.mxu0 0.0
    %745 = vmatprep.subr.mxu0 0.0
    %746 = vmatpush2.msra.mxu0 0.0
    %747 = vmatprep.subr.mxu0 0.0
    %748 = vmatpush2.msra.mxu0 0.0
    %749 = vmatprep.subr.mxu0 0.0
    %750 = vmatpush2.msra.mxu0 0.0
    %751 = vmatprep.subr.mxu0 0.0
    %752 = vmatpush2.msra.mxu0 0.0
    %753 = vmatprep.subr.mxu0 0.0
    %754 = vmatpush2.msra.mxu0 0.0
    %755 = vmatprep.subr.mxu0 0.0
    %756 = vmatpush2.msra.mxu0 0.0
    %757 = vmatprep.subr.mxu0 0.0
    %758 = vmatpush2.msra.mxu0 0.0
    %759 = vmatprep.mubr.f32.mxu0 0.0
    %760 = vmatmul.mubr.f32.gmra.mxu0 %v693
    %v761 = vpop.f32.mrf.mxu0
    %v762 = vadd.f32 0.0, %v761
    %v763 = vpop.f32.mrf.mxu0
    %764 = vdwg.mxu0
    %v766 = vrot.slane %v762, 4
    %v767 = vrot.slane %v762, 5
    %v770 = vadd.f32 %v128, %v766
    %v771 = vadd.f32 %v133, %v767
    %v772 = vxor.u32 %v770, 2147483648
    %v773 = vxor.u32 %v771, 2147483648
    %v774 = vmul.f32 %v772, 1.442695
    %v775 = vpow.pop %v774
    %v776 = vmul.f32 %v773, 1.442695
    %v777 = vpow.pop %v776
    %v778 = vadd.f32 %v775, 1.0
    %v779 = vadd.f32 %v777, 1.0
    %v780 = vrcp.pop %v778
    %v781 = vmul.f32 1.0, %v780
    %v782 = vrcp.pop %v779
    %v783 = vmul.f32 1.0, %v782
    %v784 = vtanh.pop %v770
    %v785 = vtanh.pop %v771
    %v788 = vrot.slane %v672, 7
    %v789 = vrot.slane %v673, 7
    %v792 = vmul.f32 %v781, %v788
    %v793 = vmul.f32 %v783, %v789
    %796 = vrot.lane.b32.xlu0 %v784, 32
    %v797 = vpop.permute.xlu0 %796
    %798 = vrot.lane.b32.xlu0 %v785, 32
    %v799 = vpop.permute.xlu0 %798
    %v802 = vmul.f32 %v781, %v797
    %v803 = vmul.f32 %v783, %v799
    %806 = vrot.lane.b32.xlu0 %v802, 32
    %v807 = vpop.permute.xlu0 %806
    %808 = vrot.lane.b32.xlu0 %v803, 32
    %v809 = vpop.permute.xlu0 %808
    %v812 = vadd.f32 %v792, %v807
    %v813 = vadd.f32 %v793, %v809
    %v814 = vtanh.pop %v812
    %v815 = vtanh.pop %v813
    %818 = vrot.lane.b32.xlu0 %v814, 32
    %v819 = vpop.permute.xlu0 %818
    %820 = vrot.lane.b32.xlu0 %v815, 32
    %v821 = vpop.permute.xlu0 %820
    %v824 = vmul.f32 %v781, %v819
    %v825 = vmul.f32 %v783, %v821
    %v828 = vrot.slane %v824, 4
    %v829 = vrot.slane %v825, 3
    %v830 = vsel %vm271, %v829, %v828
    %831 = vrot.lane.b32.xlu0 %v830, 64
    %v832 = vpop.permute.xlu0 %831
    %v833 = vsel %vm140, %v832, 0
    %835 = vmatprep.subr.mxu0 0.0
    %836 = vmatpush1.msra.mxu0 0.0
    %837 = vmatprep.subr.mxu0 0.0
    %838 = vmatpush1.msra.mxu0 0.0
    %839 = vmatprep.subr.mxu0 0.0
    %840 = vmatpush1.msra.mxu0 0.0
    %841 = vmatprep.subr.mxu0 0.0
    %842 = vmatpush1.msra.mxu0 0.0
    %843 = vmatprep.subr.mxu0 0.0
    %844 = vmatpush1.msra.mxu0 0.0
    %845 = vmatprep.subr.mxu0 0.0
    %846 = vmatpush1.msra.mxu0 0.0
    %847 = vmatprep.subr.mxu0 0.0
    %848 = vmatpush1.msra.mxu0 0.0
    %849 = vmatprep.subr.mxu0 0.0
    %850 = vmatpush1.msra.mxu0 0.0
    %851 = vmatprep.subr.mxu0 0.0
    %852 = vmatpush1.msra.mxu0 0.0
    %853 = vmatprep.subr.mxu0 0.0
    %854 = vmatpush1.msra.mxu0 0.0
    %855 = vmatprep.subr.mxu0 0.0
    %856 = vmatpush1.msra.mxu0 0.0
    %857 = vmatprep.subr.mxu0 0.0
    %858 = vmatpush1.msra.mxu0 0.0
    %859 = vmatprep.subr.mxu0 0.0
    %860 = vmatpush1.msra.mxu0 %v139
    %861 = vmatprep.subr.mxu0 0.0
    %862 = vmatpush1.msra.mxu0 %v138
    %863 = vmatprep.subr.mxu0 0.0
    %864 = vmatpush1.msra.mxu0 %v137
    %865 = vmatprep.subr.mxu0 0.0
    %866 = vmatpush1.msra.mxu0 %v136
    %867 = vmatprep.subr.mxu0 0.0
    %868 = vmatpush2.msra.mxu0 0.0
    %869 = vmatprep.subr.mxu0 0.0
    %870 = vmatpush2.msra.mxu0 0.0
    %871 = vmatprep.subr.mxu0 0.0
    %872 = vmatpush2.msra.mxu0 0.0
    %873 = vmatprep.subr.mxu0 0.0
    %874 = vmatpush2.msra.mxu0 0.0
    %875 = vmatprep.subr.mxu0 0.0
    %876 = vmatpush2.msra.mxu0 0.0
    %877 = vmatprep.subr.mxu0 0.0
    %878 = vmatpush2.msra.mxu0 0.0
    %879 = vmatprep.subr.mxu0 0.0
    %880 = vmatpush2.msra.mxu0 0.0
    %881 = vmatprep.subr.mxu0 0.0
    %882 = vmatpush2.msra.mxu0 0.0
    %883 = vmatprep.subr.mxu0 0.0
    %884 = vmatpush2.msra.mxu0 0.0
    %885 = vmatprep.subr.mxu0 0.0
    %886 = vmatpush2.msra.mxu0 0.0
    %887 = vmatprep.subr.mxu0 0.0
    %888 = vmatpush2.msra.mxu0 0.0
    %889 = vmatprep.subr.mxu0 0.0
    %890 = vmatpush2.msra.mxu0 0.0
    %891 = vmatprep.subr.mxu0 0.0
    %892 = vmatpush2.msra.mxu0 0.0
    %893 = vmatprep.subr.mxu0 0.0
    %894 = vmatpush2.msra.mxu0 0.0
    %895 = vmatprep.subr.mxu0 0.0
    %896 = vmatpush2.msra.mxu0 0.0
    %897 = vmatprep.subr.mxu0 0.0
    %898 = vmatpush2.msra.mxu0 0.0
    %899 = vmatprep.mubr.f32.mxu0 0.0
    %900 = vmatmul.mubr.f32.gmra.mxu0 %v833
    %v901 = vpop.f32.mrf.mxu0
    %v902 = vadd.f32 0.0, %v901
    %v903 = vpop.f32.mrf.mxu0
    %904 = vdwg.mxu0
    %v906 = vrot.slane %v902, 3
    %v907 = vrot.slane %v902, 4
    %v910 = vadd.f32 %v128, %v906
    %v911 = vadd.f32 %v133, %v907
    %v912 = vxor.u32 %v910, 2147483648
    %v913 = vxor.u32 %v911, 2147483648
    %v914 = vmul.f32 %v912, 1.442695
    %v915 = vpow.pop %v914
    %v916 = vmul.f32 %v913, 1.442695
    %v917 = vpow.pop %v916
    %v918 = vadd.f32 %v915, 1.0
    %v919 = vadd.f32 %v917, 1.0
    %v920 = vrcp.pop %v918
    %v921 = vmul.f32 1.0, %v920
    %v922 = vrcp.pop %v919
    %v923 = vmul.f32 1.0, %v922
    %v924 = vtanh.pop %v910
    %v925 = vtanh.pop %v911
    %v928 = vrot.slane %v812, 7
    %v929 = vrot.slane %v813, 7
    %v932 = vmul.f32 %v921, %v928
    %v933 = vmul.f32 %v923, %v929
    %936 = vrot.lane.b32.xlu0 %v924, 32
    %v937 = vpop.permute.xlu0 %936
    %938 = vrot.lane.b32.xlu0 %v925, 32
    %v939 = vpop.permute.xlu0 %938
    %v942 = vmul.f32 %v921, %v937
    %v943 = vmul.f32 %v923, %v939
    %946 = vrot.lane.b32.xlu0 %v942, 32
    %v947 = vpop.permute.xlu0 %946
    %948 = vrot.lane.b32.xlu0 %v943, 32
    %v949 = vpop.permute.xlu0 %948
    %v952 = vadd.f32 %v932, %v947
    %v953 = vadd.f32 %v933, %v949
    %v954 = vtanh.pop %v952
    %v955 = vtanh.pop %v953
    %958 = vrot.lane.b32.xlu0 %v954, 32
    %v959 = vpop.permute.xlu0 %958
    %960 = vrot.lane.b32.xlu0 %v955, 32
    %v961 = vpop.permute.xlu0 %960
    %v964 = vmul.f32 %v921, %v959
    %v965 = vmul.f32 %v923, %v961
    %v968 = vrot.slane %v964, 5
    %v969 = vrot.slane %v965, 4
    %v970 = vsel %vm271, %v969, %v968
    %971 = vrot.lane.b32.xlu0 %v970, 64
    %v972 = vpop.permute.xlu0 %971
    %v973 = vsel %vm140, %v972, 0
    %975 = vmatprep.subr.mxu0 0.0
    %976 = vmatpush1.msra.mxu0 0.0
    %977 = vmatprep.subr.mxu0 0.0
    %978 = vmatpush1.msra.mxu0 0.0
    %979 = vmatprep.subr.mxu0 0.0
    %980 = vmatpush1.msra.mxu0 0.0
    %981 = vmatprep.subr.mxu0 0.0
    %982 = vmatpush1.msra.mxu0 0.0
    %983 = vmatprep.subr.mxu0 0.0
    %984 = vmatpush1.msra.mxu0 0.0
    %985 = vmatprep.subr.mxu0 0.0
    %986 = vmatpush1.msra.mxu0 0.0
    %987 = vmatprep.subr.mxu0 0.0
    %988 = vmatpush1.msra.mxu0 0.0
    %989 = vmatprep.subr.mxu0 0.0
    %990 = vmatpush1.msra.mxu0 0.0
    %991 = vmatprep.subr.mxu0 0.0
    %992 = vmatpush1.msra.mxu0 0.0
    %993 = vmatprep.subr.mxu0 0.0
    %994 = vmatpush1.msra.mxu0 0.0
    %995 = vmatprep.subr.mxu0 0.0
    %996 = vmatpush1.msra.mxu0 0.0
    %997 = vmatprep.subr.mxu0 0.0
    %998 = vmatpush1.msra.mxu0 0.0
    %999 = vmatprep.subr.mxu0 0.0
    %1000 = vmatpush1.msra.mxu0 %v139
    %1001 = vmatprep.subr.mxu0 0.0
    %1002 = vmatpush1.msra.mxu0 %v138
    %1003 = vmatprep.subr.mxu0 0.0
    %1004 = vmatpush1.msra.mxu0 %v137
    %1005 = vmatprep.subr.mxu0 0.0
    %1006 = vmatpush1.msra.mxu0 %v136
    %1007 = vmatprep.subr.mxu0 0.0
    %1008 = vmatpush2.msra.mxu0 0.0
    %1009 = vmatprep.subr.mxu0 0.0
    %1010 = vmatpush2.msra.mxu0 0.0
    %1011 = vmatprep.subr.mxu0 0.0
    %1012 = vmatpush2.msra.mxu0 0.0
    %1013 = vmatprep.subr.mxu0 0.0
    %1014 = vmatpush2.msra.mxu0 0.0
    %1015 = vmatprep.subr.mxu0 0.0
    %1016 = vmatpush2.msra.mxu0 0.0
    %1017 = vmatprep.subr.mxu0 0.0
    %1018 = vmatpush2.msra.mxu0 0.0
    %1019 = vmatprep.subr.mxu0 0.0
    %1020 = vmatpush2.msra.mxu0 0.0
    %1021 = vmatprep.subr.mxu0 0.0
    %1022 = vmatpush2.msra.mxu0 0.0
    %1023 = vmatprep.subr.mxu0 0.0
    %1024 = vmatpush2.msra.mxu0 0.0
    %1025 = vmatprep.subr.mxu0 0.0
    %1026 = vmatpush2.msra.mxu0 0.0
    %1027 = vmatprep.subr.mxu0 0.0
    %1028 = vmatpush2.msra.mxu0 0.0
    %1029 = vmatprep.subr.mxu0 0.0
    %1030 = vmatpush2.msra.mxu0 0.0
    %1031 = vmatprep.subr.mxu0 0.0
    %1032 = vmatpush2.msra.mxu0 0.0
    %1033 = vmatprep.subr.mxu0 0.0
    %1034 = vmatpush2.msra.mxu0 0.0
    %1035 = vmatprep.subr.mxu0 0.0
    %1036 = vmatpush2.msra.mxu0 0.0
    %1037 = vmatprep.subr.mxu0 0.0
    %1038 = vmatpush2.msra.mxu0 0.0
    %1039 = vmatprep.mubr.f32.mxu0 0.0
    %1040 = vmatmul.mubr.f32.gmra.mxu0 %v973
    %v1041 = vpop.f32.mrf.mxu0
    %v1042 = vadd.f32 0.0, %v1041
    %v1043 = vpop.f32.mrf.mxu0
    %1044 = vdwg.mxu0
    %v1046 = vrot.slane %v1042, 2
    %v1047 = vrot.slane %v1042, 3
    %v1050 = vadd.f32 %v128, %v1046
    %v1051 = vadd.f32 %v133, %v1047
    %v1052 = vxor.u32 %v1050, 2147483648
    %v1053 = vxor.u32 %v1051, 2147483648
    %v1054 = vmul.f32 %v1052, 1.442695
    %v1055 = vpow.pop %v1054
    %v1056 = vmul.f32 %v1053, 1.442695
    %v1057 = vpow.pop %v1056
    %v1058 = vadd.f32 %v1055, 1.0
    %v1059 = vadd.f32 %v1057, 1.0
    %v1060 = vrcp.pop %v1058
    %v1061 = vmul.f32 1.0, %v1060
    %v1062 = vrcp.pop %v1059
    %v1063 = vmul.f32 1.0, %v1062
    %v1064 = vtanh.pop %v1050
    %v1065 = vtanh.pop %v1051
    %v1068 = vrot.slane %v952, 7
    %v1069 = vrot.slane %v953, 7
    %v1072 = vmul.f32 %v1061, %v1068
    %v1073 = vmul.f32 %v1063, %v1069
    %1076 = vrot.lane.b32.xlu0 %v1064, 32
    %v1077 = vpop.permute.xlu0 %1076
    %1078 = vrot.lane.b32.xlu0 %v1065, 32
    %v1079 = vpop.permute.xlu0 %1078
    %v1082 = vmul.f32 %v1061, %v1077
    %v1083 = vmul.f32 %v1063, %v1079
    %1086 = vrot.lane.b32.xlu0 %v1082, 32
    %v1087 = vpop.permute.xlu0 %1086
    %1088 = vrot.lane.b32.xlu0 %v1083, 32
    %v1089 = vpop.permute.xlu0 %1088
    %v1092 = vadd.f32 %v1072, %v1087
    %v1093 = vadd.f32 %v1073, %v1089
    %v1094 = vtanh.pop %v1092
    %v1095 = vtanh.pop %v1093
    %1098 = vrot.lane.b32.xlu0 %v1094, 32
    %v1099 = vpop.permute.xlu0 %1098
    %1100 = vrot.lane.b32.xlu0 %v1095, 32
    %v1101 = vpop.permute.xlu0 %1100
    %v1104 = vmul.f32 %v1061, %v1099
    %v1105 = vmul.f32 %v1063, %v1101
    %v1108 = vrot.slane %v1104, 6
    %v1109 = vrot.slane %v1105, 5
    %v1110 = vsel %vm271, %v1109, %v1108
    %1111 = vrot.lane.b32.xlu0 %v1110, 64
    %v1112 = vpop.permute.xlu0 %1111
    %v1113 = vsel %vm140, %v1112, 0
    %1115 = vmatprep.subr.mxu0 0.0
    %1116 = vmatpush1.msra.mxu0 0.0
    %1117 = vmatprep.subr.mxu0 0.0
    %1118 = vmatpush1.msra.mxu0 0.0
    %1119 = vmatprep.subr.mxu0 0.0
    %1120 = vmatpush1.msra.mxu0 0.0
    %1121 = vmatprep.subr.mxu0 0.0
    %1122 = vmatpush1.msra.mxu0 0.0
    %1123 = vmatprep.subr.mxu0 0.0
    %1124 = vmatpush1.msra.mxu0 0.0
    %1125 = vmatprep.subr.mxu0 0.0
    %1126 = vmatpush1.msra.mxu0 0.0
    %1127 = vmatprep.subr.mxu0 0.0
    %1128 = vmatpush1.msra.mxu0 0.0
    %1129 = vmatprep.subr.mxu0 0.0
    %1130 = vmatpush1.msra.mxu0 0.0
    %1131 = vmatprep.subr.mxu0 0.0
    %1132 = vmatpush1.msra.mxu0 0.0
    %1133 = vmatprep.subr.mxu0 0.0
    %1134 = vmatpush1.msra.mxu0 0.0
    %1135 = vmatprep.subr.mxu0 0.0
    %1136 = vmatpush1.msra.mxu0 0.0
    %1137 = vmatprep.subr.mxu0 0.0
    %1138 = vmatpush1.msra.mxu0 0.0
    %1139 = vmatprep.subr.mxu0 0.0
    %1140 = vmatpush1.msra.mxu0 %v139
    %1141 = vmatprep.subr.mxu0 0.0
    %1142 = vmatpush1.msra.mxu0 %v138
    %1143 = vmatprep.subr.mxu0 0.0
    %1144 = vmatpush1.msra.mxu0 %v137
    %1145 = vmatprep.subr.mxu0 0.0
    %1146 = vmatpush1.msra.mxu0 %v136
    %1147 = vmatprep.subr.mxu0 0.0
    %1148 = vmatpush2.msra.mxu0 0.0
    %1149 = vmatprep.subr.mxu0 0.0
    %1150 = vmatpush2.msra.mxu0 0.0
    %1151 = vmatprep.subr.mxu0 0.0
    %1152 = vmatpush2.msra.mxu0 0.0
    %1153 = vmatprep.subr.mxu0 0.0
    %1154 = vmatpush2.msra.mxu0 0.0
    %1155 = vmatprep.subr.mxu0 0.0
    %1156 = vmatpush2.msra.mxu0 0.0
    %1157 = vmatprep.subr.mxu0 0.0
    %1158 = vmatpush2.msra.mxu0 0.0
    %1159 = vmatprep.subr.mxu0 0.0
    %1160 = vmatpush2.msra.mxu0 0.0
    %1161 = vmatprep.subr.mxu0 0.0
    %1162 = vmatpush2.msra.mxu0 0.0
    %1163 = vmatprep.subr.mxu0 0.0
    %1164 = vmatpush2.msra.mxu0 0.0
    %1165 = vmatprep.subr.mxu0 0.0
    %1166 = vmatpush2.msra.mxu0 0.0
    %1167 = vmatprep.subr.mxu0 0.0
    %1168 = vmatpush2.msra.mxu0 0.0
    %1169 = vmatprep.subr.mxu0 0.0
    %1170 = vmatpush2.msra.mxu0 0.0
    %1171 = vmatprep.subr.mxu0 0.0
    %1172 = vmatpush2.msra.mxu0 0.0
    %1173 = vmatprep.subr.mxu0 0.0
    %1174 = vmatpush2.msra.mxu0 0.0
    %1175 = vmatprep.subr.mxu0 0.0
    %1176 = vmatpush2.msra.mxu0 0.0
    %1177 = vmatprep.subr.mxu0 0.0
    %1178 = vmatpush2.msra.mxu0 0.0
    %1179 = vmatprep.mubr.f32.mxu0 0.0
    %1180 = vmatmul.mubr.f32.gmra.mxu0 %v1113
    %v1181 = vpop.f32.mrf.mxu0
    %v1182 = vadd.f32 0.0, %v1181
    %v1183 = vpop.f32.mrf.mxu0
    %1184 = vdwg.mxu0
    %v1186 = vrot.slane %v1182, 1
    %v1187 = vrot.slane %v1182, 2
    %v1190 = vadd.f32 %v128, %v1186
    %v1191 = vadd.f32 %v133, %v1187
    %v1192 = vxor.u32 %v1190, 2147483648
    %v1193 = vxor.u32 %v1191, 2147483648
    %v1194 = vmul.f32 %v1192, 1.442695
    %v1195 = vpow.pop %v1194
    %v1196 = vmul.f32 %v1193, 1.442695
    %v1197 = vpow.pop %v1196
    %v1198 = vadd.f32 %v1195, 1.0
    %v1199 = vadd.f32 %v1197, 1.0
    %v1200 = vrcp.pop %v1198
    %v1201 = vmul.f32 1.0, %v1200
    %v1202 = vrcp.pop %v1199
    %v1203 = vmul.f32 1.0, %v1202
    %v1204 = vtanh.pop %v1190
    %v1205 = vtanh.pop %v1191
    %v1208 = vrot.slane %v1092, 7
    %v1209 = vrot.slane %v1093, 7
    %v1212 = vmul.f32 %v1201, %v1208
    %v1213 = vmul.f32 %v1203, %v1209
    %1216 = vrot.lane.b32.xlu0 %v1204, 32
    %v1217 = vpop.permute.xlu0 %1216
    %1218 = vrot.lane.b32.xlu0 %v1205, 32
    %v1219 = vpop.permute.xlu0 %1218
    %v1222 = vmul.f32 %v1201, %v1217
    %v1223 = vmul.f32 %v1203, %v1219
    %1226 = vrot.lane.b32.xlu0 %v1222, 32
    %v1227 = vpop.permute.xlu0 %1226
    %1228 = vrot.lane.b32.xlu0 %v1223, 32
    %v1229 = vpop.permute.xlu0 %1228
    %v1232 = vadd.f32 %v1212, %v1227
    %v1233 = vadd.f32 %v1213, %v1229
    %v1234 = vtanh.pop %v1232
    %v1235 = vtanh.pop %v1233
    %1238 = vrot.lane.b32.xlu0 %v1234, 32
    %v1239 = vpop.permute.xlu0 %1238
    %1240 = vrot.lane.b32.xlu0 %v1235, 32
    %v1241 = vpop.permute.xlu0 %1240
    %v1244 = vmul.f32 %v1201, %v1239
    %v1245 = vmul.f32 %v1203, %v1241
    %v1246 = vld [vmem:[%s4] sm:$0xff]
    %v1247 = vld [vmem:[%s4 + $0x8] sm:$0xff]
    %v1248 = vld [vmem:[%s4 + $0x10] sm:$0xff]
    %v1249 = vld [vmem:[%s4 + $0x18] sm:$0xff]
    %v1250 = vld [vmem:[%s5] sm:$0x1]
    %v1252 = vlaneseq
    %v1253 = vshrl.u32 %v1252, 7
    %v1254 = vsub.s32 0, %v1253
    %v1255 = vrot.slane %v1250, %v1254
    %v1259 = vrot.slane %v1244, 7
    %v1260 = vrot.slane %v1245, 6
    %v1261 = vsel %vm271, %v1260, %v1259
    %1262 = vrot.lane.b32.xlu0 %v1261, 64
    %v1263 = vpop.permute.xlu0 %1262
    %v1264 = vsel %vm140, %v1263, 0
    %1266 = vmatprep.subr.mxu0 0.0
    %1267 = vmatpush1.msra.mxu0 0.0
    %1268 = vmatprep.subr.mxu0 0.0
    %1269 = vmatpush1.msra.mxu0 0.0
    %1270 = vmatprep.subr.mxu0 0.0
    %1271 = vmatpush1.msra.mxu0 0.0
    %1272 = vmatprep.subr.mxu0 0.0
    %1273 = vmatpush1.msra.mxu0 0.0
    %1274 = vmatprep.subr.mxu0 0.0
    %1275 = vmatpush1.msra.mxu0 0.0
    %1276 = vmatprep.subr.mxu0 0.0
    %1277 = vmatpush1.msra.mxu0 0.0
    %1278 = vmatprep.subr.mxu0 0.0
    %1279 = vmatpush1.msra.mxu0 0.0
    %1280 = vmatprep.subr.mxu0 0.0
    %1281 = vmatpush1.msra.mxu0 0.0
    %1282 = vmatprep.subr.mxu0 0.0
    %1283 = vmatpush1.msra.mxu0 0.0
    %1284 = vmatprep.subr.mxu0 0.0
    %1285 = vmatpush1.msra.mxu0 0.0
    %1286 = vmatprep.subr.mxu0 0.0
    %1287 = vmatpush1.msra.mxu0 0.0
    %1288 = vmatprep.subr.mxu0 0.0
    %1289 = vmatpush1.msra.mxu0 0.0
    %1290 = vmatprep.subr.mxu0 0.0
    %1291 = vmatpush1.msra.mxu0 %v1249
    %1292 = vmatprep.subr.mxu0 0.0
    %1293 = vmatpush1.msra.mxu0 %v1248
    %1294 = vmatprep.subr.mxu0 0.0
    %1295 = vmatpush1.msra.mxu0 %v1247
    %1296 = vmatprep.subr.mxu0 0.0
    %1297 = vmatpush1.msra.mxu0 %v1246
    %1298 = vmatprep.subr.mxu0 0.0
    %1299 = vmatpush2.msra.mxu0 0.0
    %1300 = vmatprep.subr.mxu0 0.0
    %1301 = vmatpush2.msra.mxu0 0.0
    %1302 = vmatprep.subr.mxu0 0.0
    %1303 = vmatpush2.msra.mxu0 0.0
    %1304 = vmatprep.subr.mxu0 0.0
    %1305 = vmatpush2.msra.mxu0 0.0
    %1306 = vmatprep.subr.mxu0 0.0
    %1307 = vmatpush2.msra.mxu0 0.0
    %1308 = vmatprep.subr.mxu0 0.0
    %1309 = vmatpush2.msra.mxu0 0.0
    %1310 = vmatprep.subr.mxu0 0.0
    %1311 = vmatpush2.msra.mxu0 0.0
    %1312 = vmatprep.subr.mxu0 0.0
    %1313 = vmatpush2.msra.mxu0 0.0
    %1314 = vmatprep.subr.mxu0 0.0
    %1315 = vmatpush2.msra.mxu0 0.0
    %1316 = vmatprep.subr.mxu0 0.0
    %1317 = vmatpush2.msra.mxu0 0.0
    %1318 = vmatprep.subr.mxu0 0.0
    %1319 = vmatpush2.msra.mxu0 0.0
    %1320 = vmatprep.subr.mxu0 0.0
    %1321 = vmatpush2.msra.mxu0 0.0
    %1322 = vmatprep.subr.mxu0 0.0
    %1323 = vmatpush2.msra.mxu0 0.0
    %1324 = vmatprep.subr.mxu0 0.0
    %1325 = vmatpush2.msra.mxu0 0.0
    %1326 = vmatprep.subr.mxu0 0.0
    %1327 = vmatpush2.msra.mxu0 0.0
    %1328 = vmatprep.subr.mxu0 0.0
    %1329 = vmatpush2.msra.mxu0 0.0
    %1330 = vmatprep.mubr.f32.mxu0 0.0
    %1331 = vmatmul.mubr.f32.gmra.mxu0 %v1264
    %v1332 = vpop.f32.mrf.mxu0
    %v1333 = vadd.f32 %v1255, %v1332
    %v1334 = vpop.f32.mrf.mxu0
    %1335 = vdwg.mxu0
    %vm1336 = vcmask 123904
    %1337 = vst.msk [vmem:[#allocation5] sm:$0x3] %vm1336, %v1333
    // Predicated region
    $region30: #{tpu_custom_call.1} parent=1 // pred_check
      _
    $region31: #{tpu_custom_call.1} parent=1 // pred_check_branch
      %1339 = sbr.rel (0) target = $region33
    $region32: #{tpu_custom_call.1} parent=1 // pred_region
      %s1341 = ssub.s32 32, 32
      %1342 = vsyncadd [#allocation4], %s1341
      %s1344 = sshll.u32 [#allocation5], 4
      %s1345 = int_to_ptr.vmem [resolvable:$true] %s1344
      %1347 = dma.vmem_to_hbm [thread:$0]  %s1345, 32, %s6, [#allocation4]
    $region33: #{tpu_custom_call.1} parent=1 // pred_fallthru
      _
    // Predicated region
    $region34: #{tpu_custom_call.1} parent=1 // pred_check
      _
    $region35: #{tpu_custom_call.1} parent=1 // pred_check_branch
      %1349 = sbr.rel (0) target = $region37
    $region36: #{tpu_custom_call.1} parent=1 // pred_region
      %1350 = dma.done [#allocation4], 32
    $region37: #{tpu_custom_call.1} parent=1 // pred_fallthru
      _
    %1351 = vsyncpa [#allocation3], 1
    %1352 = vsyncpa [#allocation4], 1

</llo_original>
